<compile_context>
chip_gen: v7x
topology: tpu7x:2x2x1
jax: 0.10.0
libtpu: 0.0.40
codegen_flags: <defaults>
</compile_context>

<pallas_src>
import functools
from typing import NamedTuple

import jax
import jax.numpy as jnp
from jax.experimental import pallas as pl
from jax.experimental.pallas import tpu as pltpu

_LANE = 128
_TOKEN_ALIGN = 16  # sublane-friendly for bf16 and f32 tiles


def _round_up(x, m):
    return (x + m - 1) // m * m


# --------------------------------------------------------------------------
# Kernels
# --------------------------------------------------------------------------
def _shared_expert_resident_kernel(x_ref, w1_ref, b1_ref, w2_ref, b2_ref, o_ref):
    """Weights fully VMEM-resident; grid iterates token tiles only."""
    x = x_ref[...].astype(w1_ref.dtype)
    h = jnp.dot(x, w1_ref[...], preferred_element_type=jnp.float32)
    h = jnp.maximum(h + b1_ref[...], 0.0)
    # TODO(synk): dropout is identity (eval-mode); training dropout would need
    # pltpu.prng_seed + pltpu.prng_random_bits with a 1/(1-p)-scaled mask.
    o = jnp.dot(h.astype(w2_ref.dtype), w2_ref[...],
                preferred_element_type=jnp.float32) + b2_ref[...]
    o_ref[...] = o.astype(o_ref.dtype)


def _shared_expert_streamed_kernel(x_ref, w1_ref, b1_ref, w2_ref, b2_ref, o_ref,
                                   acc_ref):
    """Hidden dim chunked on a trailing reduction axis; f32 accumulator."""
    k = pl.program_id(1)

    @pl.when(k == 0)
    def _():
        acc_ref[...] = jnp.zeros_like(acc_ref)

    x = x_ref[...].astype(w1_ref.dtype)
    # fc1 chunk: [tm, D_in] @ [D_in, th]; bias + ReLU are elementwise over H,
    # so applying them per hidden chunk is exact.
    h = jnp.dot(x, w1_ref[...], preferred_element_type=jnp.float32)
    h = jnp.maximum(h + b1_ref[...], 0.0)
    # TODO(synk): dropout is identity (eval-mode).
    acc_ref[...] += jnp.dot(h.astype(w2_ref.dtype), w2_ref[...],
                            preferred_element_type=jnp.float32)

    @pl.when(k == pl.num_programs(1) - 1)
    def _():
        o_ref[...] = (acc_ref[...] + b2_ref[...]).astype(o_ref.dtype)


# --------------------------------------------------------------------------
# Planner helpers
# --------------------------------------------------------------------------
def _vmem_budget():
    """(usable budget, hard cap) in bytes, per chip generation."""
    try:
        phys = int(pltpu.get_tpu_info().vmem_capacity_bytes)
    except Exception:
        phys = 64 << 20  # conservative (v7x-sized) fallback
    if phys >= (96 << 20):          # v5e / v6e: 128 MiB physical VMEM
        budget = 100 << 20
    else:                           # v7x: 64 MiB physical per TensorCore
        budget = max(phys - (8 << 20), 24 << 20)
    hard_cap = max(int(phys * 0.9), budget)
    return budget, hard_cap


def _choose_tm(n_tokens, preferred, min_tiles=1):
    """Token tile: near `preferred`, sublane-aligned, minimal padding waste."""
    n_tiles = max(pl.cdiv(n_tokens, preferred), min_tiles)
    tm = _round_up(pl.cdiv(n_tokens, n_tiles), _TOKEN_ALIGN)
    return min(tm, _round_up(n_tokens, _TOKEN_ALIGN))


# --------------------------------------------------------------------------
# Parameter prep (call ONCE; cached padded bf16 weights)
# --------------------------------------------------------------------------
class SharedExpertParams(NamedTuple):
    w1: jax.Array   # [D_in_p, H_p]  compute dtype (bf16)
    b1: jax.Array   # [1, H_p]       f32
    w2: jax.Array   # [H_p, D_out_p] compute dtype (bf16)
    b2: jax.Array   # [1, D_out_p]   f32
    d_in: int
    d_out: int


def prepare_shared_expert_params(w1, b1, w2, b2, *, compute_dtype=jnp.bfloat16):
    """One-time cast + zero-pad of the expert weights (hoisted out of forward)."""
    d_in, h = w1.shape
    d_out = w2.shape[1]
    d_in_p = _round_up(d_in, _LANE)
    d_out_p = _round_up(d_out, _LANE)
    # Multiple of 512 when large so 512/256/128 hidden chunks all divide H_p.
    h_p = _round_up(h, 512) if h > 512 else _round_up(h, _LANE)

    w1_p = jnp.pad(w1.astype(compute_dtype), ((0, d_in_p - d_in), (0, h_p - h)))
    b1_p = jnp.pad(b1.astype(jnp.float32), (0, h_p - h)).reshape(1, h_p)
    w2_p = jnp.pad(w2.astype(compute_dtype), ((0, h_p - h), (0, d_out_p - d_out)))
    b2_p = jnp.pad(b2.astype(jnp.float32), (0, d_out_p - d_out)).reshape(1, d_out_p)
    return SharedExpertParams(w1_p, b1_p, w2_p, b2_p, int(d_in), int(d_out))


# --------------------------------------------------------------------------
# Forward
# --------------------------------------------------------------------------
@functools.partial(jax.jit, static_argnames=("d_in", "d_out"))
def _forward_padded(x, w1_p, b1_p, w2_p, b2_p, *, d_in, d_out):
    lead = x.shape[:-1]
    n_tokens = 1
    for s in lead:
        n_tokens *= s
    d_in_p, h_p = w1_p.shape
    d_out_p = w2_p.shape[1]
    out_dtype = x.dtype
    compute_dtype = w1_p.dtype

    xt = x.reshape(n_tokens, d_in)
    if d_in != d_in_p:
        # Feature padding needed; cast at the same time (no extra pass).
        # Zero-padding is safe: matching W1 rows are zero.
        xt = jnp.pad(xt.astype(compute_dtype), ((0, 0), (0, d_in_p - d_in)))

    x_itemsize = jnp.dtype(xt.dtype).itemsize
    w_itemsize = jnp.dtype(compute_dtype).itemsize
    out_itemsize = jnp.dtype(out_dtype).itemsize

    budget, hard_cap = _vmem_budget()
    big_vmem = budget >= (96 << 20)
    pref_tm = 512 if big_vmem else 256

    def act_bytes(tm_, h_cols):
        return (2 * tm_ * d_in_p * x_itemsize          # x tile (double-buffered)
                + 2 * tm_ * d_out_p * out_itemsize     # out tile (double-buffered)
                + tm_ * h_cols * (4 + w_itemsize)      # f32 fc1 slab + bf16 copy
                + tm_ * d_in_p * w_itemsize)           # in-kernel x cast

    weight_bytes_resident = (2 * (d_in_p * h_p + h_p * d_out_p) * w_itemsize
                             + 2 * (h_p + d_out_p) * 4)

    # ------------------- resident fast path -------------------
    tm_res = _choose_tm(n_tokens, pref_tm, min_tiles=2)  # >=2 tiles feeds 2 TCs
    need_res = weight_bytes_resident + act_bytes(tm_res, h_p)

    if need_res <= budget:
        tm = tm_res
        grid = (pl.cdiv(n_tokens, tm),)
        vmem_limit = int(min(hard_cap, max(need_res + (8 << 20), 32 << 20)))
        flops = 2 * n_tokens * (d_in_p * h_p + h_p * d_out_p)
        bytes_accessed = (n_tokens * d_in_p * x_itemsize
                          + (d_in_p * h_p + h_p * d_out_p) * w_itemsize
                          + (h_p + d_out_p) * 4
                          + n_tokens * d_out_p * out_itemsize)
        out = pl.pallas_call(
            _shared_expert_resident_kernel,
            out_shape=jax.ShapeDtypeStruct((n_tokens, d_out_p), out_dtype),
            grid_spec=pltpu.PrefetchScalarGridSpec(
                num_scalar_prefetch=0,
                grid=grid,
                in_specs=[
                    pl.BlockSpec((tm, d_in_p), lambda i: (i, 0)),       # x tile
                    pl.BlockSpec((d_in_p, h_p), lambda i: (0, 0)),      # W1 (resident)
                    pl.BlockSpec((1, h_p), lambda i: (0, 0)),           # b1
                    pl.BlockSpec((h_p, d_out_p), lambda i: (0, 0)),     # W2 (resident)
                    pl.BlockSpec((1, d_out_p), lambda i: (0, 0)),       # b2
                ],
                out_specs=pl.BlockSpec((tm, d_out_p), lambda i: (i, 0)),
            ),
            compiler_params=pltpu.CompilerParams(
                dimension_semantics=("parallel",),
                vmem_limit_bytes=vmem_limit),
            cost_estimate=pl.CostEstimate(flops=int(flops), transcendentals=0,
                                          bytes_accessed=int(bytes_accessed)),
        )(xt, w1_p, b1_p, w2_p, b2_p)

    # ------------------- streamed (hidden-chunked) path -------------------
    else:
        tm = _choose_tm(n_tokens, pref_tm)
        pref_th = 1024 if big_vmem else 512
        th_cands = sorted({c for c in (h_p, 1024, 512, 256, 128)
                           if c <= max(pref_th, 128) and h_p % c == 0},
                          reverse=True)

        def need_str(tm_, th_):
            return (2 * tm_ * d_in_p * x_itemsize
                    + 2 * d_in_p * th_ * w_itemsize + 2 * th_ * 4
                    + 2 * th_ * d_out_p * w_itemsize + 2 * d_out_p * 4
                    + 2 * tm_ * d_out_p * out_itemsize
                    + tm_ * d_out_p * 4                      # f32 accumulator
                    + tm_ * th_ * (4 + w_itemsize)           # fc1 slab + bf16 copy
                    + tm_ * d_in_p * w_itemsize)             # in-kernel x cast

        th = None
        for cand in th_cands:
            if need_str(tm, cand) <= budget:
                th = cand
                break
        if th is None:
            th = th_cands[-1]
            while tm > _TOKEN_ALIGN and need_str(tm, th) > budget:
                tm = max(_round_up(tm // 2, _TOKEN_ALIGN), _TOKEN_ALIGN)

        need = need_str(tm, th)
        n_tok_tiles = pl.cdiv(n_tokens, tm)
        grid = (n_tok_tiles, h_p // th)
        vmem_limit = int(min(hard_cap, max(need + (8 << 20), 32 << 20)))
        flops = 2 * n_tokens * (d_in_p * h_p + h_p * d_out_p)
        bytes_accessed = (n_tokens * d_in_p * x_itemsize
                          + n_tok_tiles * (d_in_p * h_p + h_p * d_out_p) * w_itemsize
                          + n_tok_tiles * (h_p + d_out_p) * 4
                          + n_tokens * d_out_p * out_itemsize)
        out = pl.pallas_call(
            _shared_expert_streamed_kernel,
            out_shape=jax.ShapeDtypeStruct((n_tokens, d_out_p), out_dtype),
            grid_spec=pltpu.PrefetchScalarGridSpec(
                num_scalar_prefetch=0,
                grid=grid,
                in_specs=[
                    pl.BlockSpec((tm, d_in_p), lambda i, k: (i, 0)),     # x (held over k)
                    pl.BlockSpec((d_in_p, th), lambda i, k: (0, k)),     # W1 chunk
                    pl.BlockSpec((1, th), lambda i, k: (0, k)),          # b1 chunk
                    pl.BlockSpec((th, d_out_p), lambda i, k: (k, 0)),    # W2 chunk
                    pl.BlockSpec((1, d_out_p), lambda i, k: (0, 0)),     # b2
                ],
                out_specs=pl.BlockSpec((tm, d_out_p), lambda i, k: (i, 0)),
                scratch_shapes=[pltpu.VMEM((tm, d_out_p), jnp.float32)],
            ),
            compiler_params=pltpu.CompilerParams(
                dimension_semantics=("parallel", "arbitrary"),
                vmem_limit_bytes=vmem_limit),
            cost_estimate=pl.CostEstimate(flops=int(flops), transcendentals=0,
                                          bytes_accessed=int(bytes_accessed)),
        )(xt, w1_p, b1_p, w2_p, b2_p)

    if d_out != d_out_p:
        out = out[:, :d_out]
    return out.reshape(*lead, d_out)


def shared_expert_forward(x, params: SharedExpertParams):
    """x: [..., D_in]; params from prepare_shared_expert_params (called once)."""
    return _forward_padded(x, params.w1, params.b1, params.w2, params.b2,
                           d_in=params.d_in, d_out=params.d_out)


# --------------------------------------------------------------------------
# Init + self-test
# --------------------------------------------------------------------------
def init_shared_expert_params(key, input_dim, hidden_dim, output_dim,
                              dtype=jnp.float32):
    """Deterministic init matching nn.Linear's U(-1/sqrt(fan_in), 1/sqrt(fan_in))."""
    k1, k2, k3, k4 = jax.random.split(key, 4)
    lim1 = 1.0 / (input_dim ** 0.5)
    lim2 = 1.0 / (hidden_dim ** 0.5)
    w1 = jax.random.uniform(k1, (input_dim, hidden_dim), dtype, -lim1, lim1)
    b1 = jax.random.uniform(k2, (hidden_dim,), dtype, -lim1, lim1)
    w2 = jax.random.uniform(k3, (hidden_dim, output_dim), dtype, -lim2, lim2)
    b2 = jax.random.uniform(k4, (output_dim,), dtype, -lim2, lim2)
    return w1, b1, w2, b2


if __name__ == "__main__":
    # Small shapes consistent with the module's (input_dim, hidden_dim, output_dim) MLP.
    B, S = 2, 8          # 16 tokens
    INPUT_DIM = 32
    HIDDEN_DIM = 128
    OUTPUT_DIM = 32

    key = jax.random.PRNGKey(0)
    kx, kp = jax.random.split(key)
    x = jax.random.normal(kx, (B, S, INPUT_DIM), dtype=jnp.float32)
    w1, b1, w2, b2 = init_shared_expert_params(kp, INPUT_DIM, HIDDEN_DIM, OUTPUT_DIM)

    # One-time weight prep (cast + pad hoisted out of the per-call forward).
    params = prepare_shared_expert_params(w1, b1, w2, b2)

    out = shared_expert_forward(x, params)
    out = jax.block_until_ready(out)

    # Pure-JAX reference with matching mixed precision (bf16 operands, f32 accum);
    # eval-mode dropout == identity.
    xe = x.reshape(-1, INPUT_DIM).astype(jnp.bfloat16)
    h_ref = jnp.maximum(
        jnp.dot(xe, w1.astype(jnp.bfloat16), preferred_element_type=jnp.float32) + b1, 0.0)
    ref = jnp.dot(h_ref.astype(jnp.bfloat16), w2.astype(jnp.bfloat16),
                  preferred_element_type=jnp.float32) + b2
    ref = ref.reshape(B, S, OUTPUT_DIM).astype(x.dtype)

    assert out.shape == (B, S, OUTPUT_DIM)
    max_err = float(jnp.max(jnp.abs(out - ref)))
    assert jnp.allclose(out, ref, atol=2e-2, rtol=2e-2), max_err

    # Sanity-check against the pure-f32 reference with a bf16-appropriate tolerance.
    ref_f32 = (jnp.maximum(x.reshape(-1, INPUT_DIM) @ w1 + b1, 0.0) @ w2 + b2
               ).reshape(B, S, OUTPUT_DIM)
    assert jnp.allclose(out, ref_f32, atol=5e-2, rtol=5e-2)

    print("KERNEL_OK")
</pallas_src>

<mosaic_0001>
module attributes {stable_mosaic.version = 11 : i64} {
  func.func @_shared_expert_resident_kernel(%arg0: i32, %arg1: memref<16x128xbf16, #tpu.memory_space<vmem>>, %arg2: memref<128x128xbf16, #tpu.memory_space<vmem>>, %arg3: memref<1x128xf32, #tpu.memory_space<vmem>>, %arg4: memref<128x128xbf16, #tpu.memory_space<vmem>>, %arg5: memref<1x128xf32, #tpu.memory_space<vmem>>, %arg6: memref<16x128xf32, #tpu.memory_space<vmem>>) attributes {dimension_semantics = [#tpu.dimension_semantics<parallel>], iteration_bounds = array<i64: 1>, scalar_prefetch = 0 : i64, scratch_operands = 0 : i64, tpu.core_type = #tpu.core_type<tc>, window_params = [{transform_indices = @transform_0, window_bounds = array<i64: 16, 128>}, {pipeline_mode = #tpu.pipeline_mode<synchronous>, transform_indices = @transform_1, window_bounds = array<i64: 128, 128>}, {pipeline_mode = #tpu.pipeline_mode<synchronous>, transform_indices = @transform_2, window_bounds = array<i64: 1, 128>}, {pipeline_mode = #tpu.pipeline_mode<synchronous>, transform_indices = @transform_3, window_bounds = array<i64: 128, 128>}, {pipeline_mode = #tpu.pipeline_mode<synchronous>, transform_indices = @transform_4, window_bounds = array<i64: 1, 128>}, {transform_indices = @transform_5, window_bounds = array<i64: 16, 128>}]} {
    %c0 = arith.constant 0 : index
    %c0_0 = arith.constant 0 : index
    %0 = vector.load %arg1[%c0, %c0_0] : memref<16x128xbf16, #tpu.memory_space<vmem>>, vector<16x128xbf16>
    %c0_1 = arith.constant 0 : index
    %c0_2 = arith.constant 0 : index
    %1 = vector.load %arg2[%c0_1, %c0_2] : memref<128x128xbf16, #tpu.memory_space<vmem>>, vector<128x128xbf16>
    %cst = arith.constant dense<0.000000e+00> : vector<16x128xf32>
    %2 = tpu.matmul %0, %1, %cst {dimension_numbers = #tpu.dot_dimension_numbers<[1], [0], [0], [1], [0, 0, 1, 1], [], []>} : vector<16x128xbf16>, vector<128x128xbf16>, vector<16x128xf32> -> vector<16x128xf32>
    %c0_3 = arith.constant 0 : index
    %c0_4 = arith.constant 0 : index
    %3 = vector.load %arg3[%c0_3, %c0_4] : memref<1x128xf32, #tpu.memory_space<vmem>>, vector<1x128xf32>
    %4 = vector.broadcast %3 : vector<1x128xf32> to vector<16x128xf32>
    %5 = arith.addf %2, %4 : vector<16x128xf32>
    %cst_5 = arith.constant 0.000000e+00 : f32
    %6 = vector.broadcast %cst_5 : f32 to vector<16x128xf32>
    %7 = arith.maximumf %5, %6 : vector<16x128xf32>
    %8 = arith.truncf %7 : vector<16x128xf32> to vector<16x128xbf16>
    %c0_6 = arith.constant 0 : index
    %c0_7 = arith.constant 0 : index
    %9 = vector.load %arg4[%c0_6, %c0_7] : memref<128x128xbf16, #tpu.memory_space<vmem>>, vector<128x128xbf16>
    %cst_8 = arith.constant dense<0.000000e+00> : vector<16x128xf32>
    %10 = tpu.matmul %8, %9, %cst_8 {dimension_numbers = #tpu.dot_dimension_numbers<[1], [0], [0], [1], [0, 0, 1, 1], [], []>} : vector<16x128xbf16>, vector<128x128xbf16>, vector<16x128xf32> -> vector<16x128xf32>
    %c0_9 = arith.constant 0 : index
    %c0_10 = arith.constant 0 : index
    %11 = vector.load %arg5[%c0_9, %c0_10] : memref<1x128xf32, #tpu.memory_space<vmem>>, vector<1x128xf32>
    %12 = vector.broadcast %11 : vector<1x128xf32> to vector<16x128xf32>
    %13 = arith.addf %10, %12 : vector<16x128xf32>
    %c0_11 = arith.constant 0 : index
    %c0_12 = arith.constant 0 : index
    %14 = vector.load %arg6[%c0_11, %c0_12] : memref<16x128xf32, #tpu.memory_space<vmem>>, vector<16x128xf32>
    tpu.vector_store %arg6[%c0_11, %c0_12], %13 {strides = array<i32>} : memref<16x128xf32, #tpu.memory_space<vmem>>, vector<16x128xf32>,
    return
  }
  func.func @transform_0(%arg0: i32) -> (i32, i32) {
    %c0_i32 = arith.constant 0 : i32
    %c0_i32_0 = arith.constant 0 : i32
    return %arg0, %c0_i32 : i32, i32
  }
  func.func @transform_1(%arg0: i32) -> (i32, i32) {
    %c0_i32 = arith.constant 0 : i32
    %c0_i32_0 = arith.constant 0 : i32
    %c0_i32_1 = arith.constant 0 : i32
    return %c0_i32, %c0_i32_0 : i32, i32
  }
  func.func @transform_2(%arg0: i32) -> (i32, i32) {
    %c0_i32 = arith.constant 0 : i32
    %c0_i32_0 = arith.constant 0 : i32
    %c0_i32_1 = arith.constant 0 : i32
    return %c0_i32, %c0_i32_0 : i32, i32
  }
  func.func @transform_3(%arg0: i32) -> (i32, i32) {
    %c0_i32 = arith.constant 0 : i32
    %c0_i32_0 = arith.constant 0 : i32
    %c0_i32_1 = arith.constant 0 : i32
    return %c0_i32, %c0_i32_0 : i32, i32
  }
  func.func @transform_4(%arg0: i32) -> (i32, i32) {
    %c0_i32 = arith.constant 0 : i32
    %c0_i32_0 = arith.constant 0 : i32
    %c0_i32_1 = arith.constant 0 : i32
    return %c0_i32, %c0_i32_0 : i32, i32
  }
  func.func @transform_5(%arg0: i32) -> (i32, i32) {
    %c0_i32 = arith.constant 0 : i32
    %c0_i32_0 = arith.constant 0 : i32
    return %arg0, %c0_i32 : i32, i32
  }
}

</mosaic_0001>

<llo_original>
// kernel: _forward_padded.1
$region0: #{_forward_padded.1}
  #allocation0 [shape = 'u32[]', space=smem, size = 0x4, offset = 0x4, fixed_abs, tag = 'smem constant byte address 0x4 - core index']
  #allocation1 [shape = 'u32[144,128]{1,0:T(1,128)}', space=vmem, size = 0x12000, scoped, tag = 'internal scratch']
  %s0 = inlined_call_operand.vmem [shape: bf16[16,128], index: 0, kind: input, shape index: {}]
  %s1 = inlined_call_operand.hbm [shape: bf16[128,128], index: 1, kind: input, shape index: {}]
  %s2 = inlined_call_operand.vmem [shape: f32[1,128], index: 2, kind: input, shape index: {}]
  %s3 = inlined_call_operand.hbm [shape: bf16[128,128], index: 3, kind: input, shape index: {}]
  %s4 = inlined_call_operand.vmem [shape: f32[1,128], index: 4, kind: input, shape index: {}]
  %s5 = inlined_call_operand.vmem [shape: f32[16,128], index: 5, kind: output, shape index: {}]
  %s6 = sld [smem:[#allocation0]]
  $region38: #{_forward_padded.1} parent=0
    _
  %s8 = ssub.s32 1, %s6
  %s9 = scalar_select 0, %s8, %s6
  $region1: #{_forward_padded.1} parent=0
    #allocation2 [shape = 'u8[32768]{0}', space=vmem, size = 0x8000, scoped, tag = 'input window, operand 1, single buffered']
    #allocation3 [shape = 's32[1]{0}', space=sflag, size = 0x4, scoped, tag = 'scoped memory for _forward_padded.1']
    #allocation4 [shape = 'u8[32768]{0}', space=vmem, size = 0x8000, scoped, tag = 'input window, operand 3, single buffered']
    #allocation5 [shape = 's32[1]{0}', space=sflag, size = 0x4, scoped, tag = 'scoped memory for _forward_padded.1']
    %10 = vsyncpa [#allocation3], 0
    %11 = vsyncpa [#allocation5], 0
    // Predicated region
    $region2: #{_forward_padded.1} parent=1 // pred_check
      _
    $region3: #{_forward_padded.1} parent=1 // pred_check_branch
      %13 = sbr.rel (0) target = $region5
    $region4: #{_forward_padded.1} parent=1 // pred_region
      _
    $region5: #{_forward_padded.1} parent=1 // pred_fallthru
      _
    // Predicated region
    $region6: #{_forward_padded.1} parent=1 // pred_check
      _
    $region7: #{_forward_padded.1} parent=1 // pred_check_branch
      %15 = sbr.rel (0) target = $region9
    $region8: #{_forward_padded.1} parent=1 // pred_region
      %s17 = ssub.s32 1024, 1024
      %18 = vsyncadd [#allocation3], %s17
      %s19 = sshll.u32 [#allocation2], 4
      %s20 = int_to_ptr.vmem [resolvable:$true] %s19
      %25 = dma.hbm_to_vmem [thread:$0]  %s1, 1024, %s20, [#allocation3], 64, 64, 4
    $region9: #{_forward_padded.1} parent=1 // pred_fallthru
      _
    // Predicated region
    $region10: #{_forward_padded.1} parent=1 // pred_check
      _
    $region11: #{_forward_padded.1} parent=1 // pred_check_branch
      %27 = sbr.rel (0) target = $region13
    $region12: #{_forward_padded.1} parent=1 // pred_region
      _
    $region13: #{_forward_padded.1} parent=1 // pred_fallthru
      _
    // Predicated region
    $region14: #{_forward_padded.1} parent=1 // pred_check
      _
    $region15: #{_forward_padded.1} parent=1 // pred_check_branch
      %29 = sbr.rel (0) target = $region17
    $region16: #{_forward_padded.1} parent=1 // pred_region
      %s31 = ssub.s32 1024, 1024
      %32 = vsyncadd [#allocation5], %s31
      %s33 = sshll.u32 [#allocation4], 4
      %s34 = int_to_ptr.vmem [resolvable:$true] %s33
      %39 = dma.hbm_to_vmem [thread:$0]  %s3, 1024, %s34, [#allocation5], 64, 64, 4
    $region17: #{_forward_padded.1} parent=1 // pred_fallthru
      _
    // Predicated region
    $region18: #{_forward_padded.1} parent=1 // pred_check
      _
    $region19: #{_forward_padded.1} parent=1 // pred_check_branch
      %41 = sbr.rel (0) target = $region21
    $region20: #{_forward_padded.1} parent=1 // pred_region
      _
    $region21: #{_forward_padded.1} parent=1 // pred_fallthru
      _
    // Predicated region
    $region22: #{_forward_padded.1} parent=1 // pred_check
      _
    $region23: #{_forward_padded.1} parent=1 // pred_check_branch
      %43 = sbr.rel (0) target = $region25
    $region24: #{_forward_padded.1} parent=1 // pred_region
      %44 = dma.done [#allocation3], 1024
    $region25: #{_forward_padded.1} parent=1 // pred_fallthru
      _
    // Predicated region
    $region26: #{_forward_padded.1} parent=1 // pred_check
      _
    $region27: #{_forward_padded.1} parent=1 // pred_check_branch
      %46 = sbr.rel (0) target = $region29
    $region28: #{_forward_padded.1} parent=1 // pred_region
      %47 = dma.done [#allocation5], 1024
    $region29: #{_forward_padded.1} parent=1 // pred_fallthru
      _
    %v49 = vld [vmem:[%s0] sm:$0xf]
    %v50 = vld [vmem:[%s0 + $0x4] sm:$0xf]
    %v51 = vld [vmem:[#allocation2] sm:$0xf]
    %v52 = vld [vmem:[#allocation2 + $0x4] sm:$0xf]
    %v53 = vld [vmem:[#allocation2 + $0x8] sm:$0xf]
    %v54 = vld [vmem:[#allocation2 + $0xc] sm:$0xf]
    %v55 = vld [vmem:[#allocation2 + $0x10] sm:$0xf]
    %v56 = vld [vmem:[#allocation2 + $0x14] sm:$0xf]
    %v57 = vld [vmem:[#allocation2 + $0x18] sm:$0xf]
    %v58 = vld [vmem:[#allocation2 + $0x1c] sm:$0xf]
    %v59 = vld [vmem:[#allocation2 + $0x20] sm:$0xf]
    %v60 = vld [vmem:[#allocation2 + $0x24] sm:$0xf]
    %v61 = vld [vmem:[#allocation2 + $0x28] sm:$0xf]
    %v62 = vld [vmem:[#allocation2 + $0x2c] sm:$0xf]
    %v63 = vld [vmem:[#allocation2 + $0x30] sm:$0xf]
    %v64 = vld [vmem:[#allocation2 + $0x34] sm:$0xf]
    %v65 = vld [vmem:[#allocation2 + $0x38] sm:$0xf]
    %v66 = vld [vmem:[#allocation2 + $0x3c] sm:$0xf]
    %v67 = vld [vmem:[%s2] sm:$0x1]
    %v69 = vlaneseq
    %v70 = vshrl.u32 %v69, 7
    %v71 = vsub.s32 0, %v70
    %v72 = vrot.slane %v67, %v71
    %v76 = vunpack.c.l.b16 %v49
    %v77 = vunpack.c.l.b16 %v50
    %v78 = vpack.c.b16 %v77, %v76
    %v96 = vunpack.c.l.b16 %v51
    %v97 = vunpack.c.l.b16 %v52
    %v98 = vunpack.c.l.b16 %v53
    %v99 = vunpack.c.l.b16 %v54
    %v100 = vunpack.c.l.b16 %v55
    %v101 = vunpack.c.l.b16 %v56
    %v102 = vunpack.c.l.b16 %v57
    %v103 = vunpack.c.l.b16 %v58
    %v104 = vunpack.c.l.b16 %v59
    %v105 = vunpack.c.l.b16 %v60
    %v106 = vunpack.c.l.b16 %v61
    %v107 = vunpack.c.l.b16 %v62
    %v108 = vunpack.c.l.b16 %v63
    %v109 = vunpack.c.l.b16 %v64
    %v110 = vunpack.c.l.b16 %v65
    %v111 = vunpack.c.l.b16 %v66
    %v112 = vpack.c.b16 %v97, %v96
    %v113 = vpack.c.b16 %v99, %v98
    %v114 = vpack.c.b16 %v101, %v100
    %v115 = vpack.c.b16 %v103, %v102
    %v116 = vpack.c.b16 %v105, %v104
    %v117 = vpack.c.b16 %v107, %v106
    %v118 = vpack.c.b16 %v109, %v108
    %v119 = vpack.c.b16 %v111, %v110
    %128 = vmatprep.subr.bf16.mxu0 0
    %129 = vmatpush1.bf16.msra.mxu0 %v112
    %130 = vmatprep.subr.bf16.mxu0 0
    %131 = vmatpush1.bf16.msra.mxu0 %v113
    %132 = vmatprep.subr.bf16.mxu0 0
    %133 = vmatpush1.bf16.msra.mxu0 %v114
    %134 = vmatprep.subr.bf16.mxu0 0
    %135 = vmatpush1.bf16.msra.mxu0 %v115
    %136 = vmatprep.subr.bf16.mxu0 0
    %137 = vmatpush1.bf16.msra.mxu0 %v116
    %138 = vmatprep.subr.bf16.mxu0 0
    %139 = vmatpush1.bf16.msra.mxu0 %v117
    %140 = vmatprep.subr.bf16.mxu0 0
    %141 = vmatpush1.bf16.msra.mxu0 %v118
    %142 = vmatprep.subr.bf16.mxu0 0
    %143 = vmatpush1.bf16.msra.mxu0 %v119
    %144 = vmatprep.subr.bf16.mxu0 0
    %145 = vmatpush1.bf16.msra.mxu0 0
    %146 = vmatprep.subr.bf16.mxu0 0
    %147 = vmatpush1.bf16.msra.mxu0 0
    %148 = vmatprep.subr.bf16.mxu0 0
    %149 = vmatpush1.bf16.msra.mxu0 0
    %150 = vmatprep.subr.bf16.mxu0 0
    %151 = vmatpush1.bf16.msra.mxu0 0
    %152 = vmatprep.subr.bf16.mxu0 0
    %153 = vmatpush1.bf16.msra.mxu0 0
    %154 = vmatprep.subr.bf16.mxu0 0
    %155 = vmatpush1.bf16.msra.mxu0 0
    %156 = vmatprep.subr.bf16.mxu0 0
    %157 = vmatpush1.bf16.msra.mxu0 0
    %158 = vmatprep.subr.bf16.mxu0 0
    %159 = vmatpush1.bf16.msra.mxu0 0
    %160 = vmatprep.mubr.bf16.mxu0 0
    %161 = vmatmul.mubr.bf16.gmra.mrb[0].mxu0 %v78
    %v162 = vpop.f32.mrb[0].mxu0
    %v163 = vadd.f32 %v72, %v162
    %v164 = vpop.f32.mrb[0].mxu0
    %v165 = vpop.f32.mrb[0].mxu0
    %v166 = vadd.f32 %v72, %v165
    %v167 = vpop.f32.mrb[0].mxu0
    %168 = vdwg.mxu0
    %v169 = vmax.f32 %v163, 0.0
    %v170 = vmax.f32 %v166, 0.0
    %v171 = vpack.c.bf16 %v170, %v169
    %v172 = vld [vmem:[#allocation4] sm:$0xf]
    %v173 = vld [vmem:[#allocation4 + $0x4] sm:$0xf]
    %v174 = vld [vmem:[#allocation4 + $0x8] sm:$0xf]
    %v175 = vld [vmem:[#allocation4 + $0xc] sm:$0xf]
    %v176 = vld [vmem:[#allocation4 + $0x10] sm:$0xf]
    %v177 = vld [vmem:[#allocation4 + $0x14] sm:$0xf]
    %v178 = vld [vmem:[#allocation4 + $0x18] sm:$0xf]
    %v179 = vld [vmem:[#allocation4 + $0x1c] sm:$0xf]
    %v180 = vld [vmem:[#allocation4 + $0x20] sm:$0xf]
    %v181 = vld [vmem:[#allocation4 + $0x24] sm:$0xf]
    %v182 = vld [vmem:[#allocation4 + $0x28] sm:$0xf]
    %v183 = vld [vmem:[#allocation4 + $0x2c] sm:$0xf]
    %v184 = vld [vmem:[#allocation4 + $0x30] sm:$0xf]
    %v185 = vld [vmem:[#allocation4 + $0x34] sm:$0xf]
    %v186 = vld [vmem:[#allocation4 + $0x38] sm:$0xf]
    %v187 = vld [vmem:[#allocation4 + $0x3c] sm:$0xf]
    %v188 = vld [vmem:[%s4] sm:$0x1]
    %v190 = vlaneseq
    %v191 = vshrl.u32 %v190, 7
    %v192 = vsub.s32 0, %v191
    %v193 = vrot.slane %v188, %v192
    %v211 = vunpack.c.l.b16 %v172
    %v212 = vunpack.c.l.b16 %v173
    %v213 = vunpack.c.l.b16 %v174
    %v214 = vunpack.c.l.b16 %v175
    %v215 = vunpack.c.l.b16 %v176
    %v216 = vunpack.c.l.b16 %v177
    %v217 = vunpack.c.l.b16 %v178
    %v218 = vunpack.c.l.b16 %v179
    %v219 = vunpack.c.l.b16 %v180
    %v220 = vunpack.c.l.b16 %v181
    %v221 = vunpack.c.l.b16 %v182
    %v222 = vunpack.c.l.b16 %v183
    %v223 = vunpack.c.l.b16 %v184
    %v224 = vunpack.c.l.b16 %v185
    %v225 = vunpack.c.l.b16 %v186
    %v226 = vunpack.c.l.b16 %v187
    %v227 = vpack.c.b16 %v212, %v211
    %v228 = vpack.c.b16 %v214, %v213
    %v229 = vpack.c.b16 %v216, %v215
    %v230 = vpack.c.b16 %v218, %v217
    %v231 = vpack.c.b16 %v220, %v219
    %v232 = vpack.c.b16 %v222, %v221
    %v233 = vpack.c.b16 %v224, %v223
    %v234 = vpack.c.b16 %v226, %v225
    %243 = vmatprep.subr.bf16.mxu0 0
    %244 = vmatpush1.bf16.msra.mxu0 %v227
    %245 = vmatprep.subr.bf16.mxu0 0
    %246 = vmatpush1.bf16.msra.mxu0 %v228
    %247 = vmatprep.subr.bf16.mxu0 0
    %248 = vmatpush1.bf16.msra.mxu0 %v229
    %249 = vmatprep.subr.bf16.mxu0 0
    %250 = vmatpush1.bf16.msra.mxu0 %v230
    %251 = vmatprep.subr.bf16.mxu0 0
    %252 = vmatpush1.bf16.msra.mxu0 %v231
    %253 = vmatprep.subr.bf16.mxu0 0
    %254 = vmatpush1.bf16.msra.mxu0 %v232
    %255 = vmatprep.subr.bf16.mxu0 0
    %256 = vmatpush1.bf16.msra.mxu0 %v233
    %257 = vmatprep.subr.bf16.mxu0 0
    %258 = vmatpush1.bf16.msra.mxu0 %v234
    %259 = vmatprep.subr.bf16.mxu0 0
    %260 = vmatpush1.bf16.msra.mxu0 0
    %261 = vmatprep.subr.bf16.mxu0 0
    %262 = vmatpush1.bf16.msra.mxu0 0
    %263 = vmatprep.subr.bf16.mxu0 0
    %264 = vmatpush1.bf16.msra.mxu0 0
    %265 = vmatprep.subr.bf16.mxu0 0
    %266 = vmatpush1.bf16.msra.mxu0 0
    %267 = vmatprep.subr.bf16.mxu0 0
    %268 = vmatpush1.bf16.msra.mxu0 0
    %269 = vmatprep.subr.bf16.mxu0 0
    %270 = vmatpush1.bf16.msra.mxu0 0
    %271 = vmatprep.subr.bf16.mxu0 0
    %272 = vmatpush1.bf16.msra.mxu0 0
    %273 = vmatprep.subr.bf16.mxu0 0
    %274 = vmatpush1.bf16.msra.mxu0 0
    %275 = vmatprep.mubr.bf16.mxu0 0
    %276 = vmatmul.mubr.bf16.gmra.mrb[0].mxu0 %v171
    %v277 = vpop.f32.mrb[0].mxu0
    %v278 = vadd.f32 %v193, %v277
    %v279 = vpop.f32.mrb[0].mxu0
    %v280 = vpop.f32.mrb[0].mxu0
    %v281 = vadd.f32 %v193, %v280
    %v282 = vpop.f32.mrb[0].mxu0
    %283 = vdwg.mxu0
    %284 = vst [vmem:[%s5] sm:$0xff] %v278
    %285 = vst [vmem:[%s5 + $0x8] sm:$0xff] %v281
    // Predicated region
    $region30: #{_forward_padded.1} parent=1 // pred_check
      _
    $region31: #{_forward_padded.1} parent=1 // pred_check_branch
      %287 = sbr.rel (0) target = $region33
    $region32: #{_forward_padded.1} parent=1 // pred_region
      _
    $region33: #{_forward_padded.1} parent=1 // pred_fallthru
      _
    // Predicated region
    $region34: #{_forward_padded.1} parent=1 // pred_check
      _
    $region35: #{_forward_padded.1} parent=1 // pred_check_branch
      %289 = sbr.rel (0) target = $region37
    $region36: #{_forward_padded.1} parent=1 // pred_region
      _
    $region37: #{_forward_padded.1} parent=1 // pred_fallthru
      _
    %290 = vsyncpa [#allocation3], 1
    %291 = vsyncpa [#allocation5], 1

</llo_original>
